<compile_context>
chip_gen: v5e
topology: v5e:2x2
jax: 0.10.0
libtpu: 0.0.40
codegen_flags: <defaults>
</compile_context>

<pallas_src>
import functools

import jax
import jax.numpy as jnp
from jax import lax
from jax.experimental import pallas as pl
from jax.experimental.pallas import tpu as pltpu

EPS = 1e-3  # BatchNorm2d(eps=0.001)


# ----------------------------- tiling helpers -----------------------------

def _row_tile(rows, cap=512):
    """Largest divisor of `rows` that is <= cap and a multiple of 8 (sublane aligned)."""
    if rows <= cap:
        return rows
    for d in range(cap, 7, -1):
        if rows % d == 0 and d % 8 == 0:
            return d
    return rows  # fallback: single block


def _lead_tile(rows, cap=16):
    """Largest divisor of `rows` that is <= cap (for a leading, non-tiled block dim)."""
    if rows <= cap:
        return rows
    for d in range(cap, 0, -1):
        if rows % d == 0:
            return d
    return rows


# ----------------------------- Pallas kernels -----------------------------

def _partial_stats_kernel(x_ref, ps_ref):
    """Per-tile (sum, sum-of-squares) over rows of a (TR, CL) tile."""
    x = x_ref[...]
    s = jnp.sum(x, axis=0)
    ss = jnp.sum(x * x, axis=0)
    ps_ref[...] = jnp.stack([s, ss], axis=0)[None]          # (1, 2, CL)


def _affine_kernel(x_ref, sc_ref, sh_ref, y_ref, *, relu):
    """y = x * scale + shift  (optionally ReLU), on a (TR, CL) tile."""
    y = x_ref[...] * sc_ref[...] + sh_ref[...]
    if relu:
        y = jnp.maximum(y, 0.0)
    y_ref[...] = y


def _dwconv_stats_kernel(t_ref, w_ref, z_ref, ps_ref):
    """Depthwise 3x3 stride-2 conv from tap streams + per-tile BN2 partial stats.

    t_ref : (6, TR, Wout+1, C)  tap streams [row0-even, row0-odd, row1-even, row1-odd, row2-even, row2-odd]
    w_ref : (3, 3, C)           depthwise taps
    z_ref : (TR, Wout, C)       un-normalized conv output
    ps_ref: (1, 2, C)           per-tile (sum, sumsq) of z
    """
    w = w_ref[...]                                          # (3, 3, C)
    wout = z_ref.shape[1]
    acc = jnp.zeros(z_ref.shape, jnp.float32)
    for ki in range(3):
        e = t_ref[2 * ki]                                   # even columns  (TR, Wout+1, C)
        o = t_ref[2 * ki + 1]                               # odd columns
        acc = acc + e[:, 0:wout, :] * w[ki, 0]              # tap (ki, 0)
        acc = acc + o[:, 0:wout, :] * w[ki, 1]              # tap (ki, 1)
        acc = acc + e[:, 1:wout + 1, :] * w[ki, 2]          # tap (ki, 2)
    z_ref[...] = acc
    s = jnp.sum(acc, axis=(0, 1))
    ss = jnp.sum(acc * acc, axis=(0, 1))
    ps_ref[...] = jnp.stack([s, ss], axis=0)[None]          # (1, 2, C)


# ----------------------------- pallas_call wrappers -----------------------------

_PARALLEL = pltpu.CompilerParams(dimension_semantics=("parallel",))


def _partial_stats(x2d, tr):
    rows, cl = x2d.shape
    grid = rows // tr
    ps = pl.pallas_call(
        _partial_stats_kernel,
        out_shape=jax.ShapeDtypeStruct((grid, 2, cl), jnp.float32),
        grid=(grid,),
        in_specs=[pl.BlockSpec((tr, cl), lambda i: (i, 0))],
        out_specs=pl.BlockSpec((1, 2, cl), lambda i: (i, 0, 0)),
        compiler_params=_PARALLEL,
    )(x2d)
    return ps.sum(axis=0)                                   # (2, CL) — tiny reduce in XLA


def _affine(x2d, sc, sh, tr, *, relu):
    rows, cl = x2d.shape
    grid = rows // tr
    return pl.pallas_call(
        functools.partial(_affine_kernel, relu=relu),
        out_shape=jax.ShapeDtypeStruct((rows, cl), jnp.float32),
        grid=(grid,),
        in_specs=[pl.BlockSpec((tr, cl), lambda i: (i, 0)),
                  pl.BlockSpec((1, cl), lambda i: (0, 0)),
                  pl.BlockSpec((1, cl), lambda i: (0, 0))],
        out_specs=pl.BlockSpec((tr, cl), lambda i: (i, 0)),
        compiler_params=_PARALLEL,
    )(x2d, sc, sh)


# ----------------------------- model forward -----------------------------

def model_forward(x_nchw, g1, b1, w_dw, g2, b2):
    N, C, H, W = x_nchw.shape
    assert H % 2 == 0 and W % 2 == 0, "even spatial dims expected (stride-2 conv)"
    x = jnp.transpose(x_nchw, (0, 2, 3, 1))                 # NHWC

    # ---------------- stage 1: BN1 (batch stats) + ReLU ----------------
    M = N * H * W
    fold1 = 2 if (M % 2 == 0) else 1                        # lane-dense: fold 2 rows -> 128 lanes
    cl1 = C * fold1
    x2d = x.reshape(M // fold1, cl1)

    tr1 = _row_tile(M // fold1)
    tot1 = _partial_stats(x2d, tr1)                         # (2, cl1)
    if fold1 == 2:
        tot1 = tot1[:, :C] + tot1[:, C:]
    mean1 = tot1[0] / M
    var1 = tot1[1] / M - mean1 * mean1                      # biased batch variance, one pass
    inv1 = lax.rsqrt(var1 + EPS)
    scale1 = g1 * inv1
    shift1 = b1 - mean1 * scale1

    y2d = _affine(x2d,
                  jnp.tile(scale1, fold1)[None, :],
                  jnp.tile(shift1, fold1)[None, :],
                  tr1, relu=True)
    y = y2d.reshape(N, H, W, C)

    # ---------------- glue: pad + tap-stream split (no 9x im2col) ----------------
    Hout = (H + 2 - 3) // 2 + 1
    Wout = (W + 2 - 3) // 2 + 1
    Wh = Wout + 1
    yp = jnp.pad(y, ((0, 0), (1, 1), (1, 1), (0, 0)))       # (N, H+2, W+2, C)
    streams = []
    for ki in range(3):                                     # kernel rows: padded rows ki, ki+2, ...
        r = yp[:, ki:ki + 2 * Hout:2, :, :]                 # (N, Hout, W+2, C)
        streams.append(r[:, :, 0::2, :])                    # even columns -> (N, Hout, Wh, C)
        streams.append(r[:, :, 1::2, :])                    # odd columns  -> (N, Hout, Wh, C)
    T = jnp.stack(streams, axis=0).reshape(6, N * Hout, Wh, C)
    w9 = jnp.transpose(w_dw[:, 0], (1, 2, 0))               # (3, 3, C)

    # ---------------- stage 2: depthwise conv + BN2 partial stats ----------------
    NR = N * Hout
    tr2 = _lead_tile(NR, cap=16)
    grid2 = NR // tr2
    z, ps2 = pl.pallas_call(
        _dwconv_stats_kernel,
        out_shape=(jax.ShapeDtypeStruct((NR, Wout, C), jnp.float32),
                   jax.ShapeDtypeStruct((grid2, 2, C), jnp.float32)),
        grid=(grid2,),
        in_specs=[pl.BlockSpec((6, tr2, Wh, C), lambda i: (0, i, 0, 0)),
                  pl.BlockSpec((3, 3, C), lambda i: (0, 0, 0))],
        out_specs=(pl.BlockSpec((tr2, Wout, C), lambda i: (i, 0, 0)),
                   pl.BlockSpec((1, 2, C), lambda i: (i, 0, 0))),
        compiler_params=_PARALLEL,
    )(T, w9)

    tot2 = ps2.sum(axis=0)                                  # (2, C)
    M2 = NR * Wout
    mean2 = tot2[0] / M2
    var2 = tot2[1] / M2 - mean2 * mean2
    inv2 = lax.rsqrt(var2 + EPS)
    scale2 = g2 * inv2
    shift2 = b2 - mean2 * scale2

    # ---------------- stage 3: BN2 apply ----------------
    fold2 = 2 if (M2 % 2 == 0) else 1
    cl2 = C * fold2
    z2d = z.reshape(M2 // fold2, cl2)
    tr3 = _row_tile(M2 // fold2)
    o2d = _affine(z2d,
                  jnp.tile(scale2, fold2)[None, :],
                  jnp.tile(shift2, fold2)[None, :],
                  tr3, relu=False)

    out = o2d.reshape(N, Hout, Wout, C)
    return jnp.transpose(out, (0, 3, 1, 2))                 # NCHW

# TODO(synk): BatchNorm running_mean/running_var (momentum=0.01) buffer updates are not modeled —
# they do not affect this forward pass (training-mode batch statistics are used, as in the spec module).


# ----------------------------- pure-JAX reference -----------------------------

def reference(x, g1, b1, w_dw, g2, b2):
    C = x.shape[1]
    m1 = x.mean(axis=(0, 2, 3), keepdims=True)
    v1 = ((x - m1) ** 2).mean(axis=(0, 2, 3), keepdims=True)
    y = (x - m1) / jnp.sqrt(v1 + EPS) * g1.reshape(1, C, 1, 1) + b1.reshape(1, C, 1, 1)
    y = jnp.maximum(y, 0.0)
    z = lax.conv_general_dilated(
        y, w_dw, window_strides=(2, 2), padding=((1, 1), (1, 1)),
        dimension_numbers=('NCHW', 'OIHW', 'NCHW'),
        feature_group_count=C, precision=lax.Precision.HIGHEST)
    m2 = z.mean(axis=(0, 2, 3), keepdims=True)
    v2 = ((z - m2) ** 2).mean(axis=(0, 2, 3), keepdims=True)
    return (z - m2) / jnp.sqrt(v2 + EPS) * g2.reshape(1, C, 1, 1) + b2.reshape(1, C, 1, 1)


if __name__ == "__main__":
    # Small shapes consistent with the module: C must be 64 (module weights),
    # spatial reduced from 112 -> 16 for a quick run.
    N, C, H, W = 1, 64, 16, 16
    key = jax.random.PRNGKey(0)
    kx, kg1, kb1, kw, kg2, kb2 = jax.random.split(key, 6)

    x = jax.random.normal(kx, (N, C, H, W), dtype=jnp.float32)
    gamma1 = 1.0 + 0.1 * jax.random.normal(kg1, (C,), dtype=jnp.float32)
    beta1 = 0.1 * jax.random.normal(kb1, (C,), dtype=jnp.float32)
    w_dw = 0.1 * jax.random.normal(kw, (C, 1, 3, 3), dtype=jnp.float32)  # groups=C, bias=False
    gamma2 = 1.0 + 0.1 * jax.random.normal(kg2, (C,), dtype=jnp.float32)
    beta2 = 0.1 * jax.random.normal(kb2, (C,), dtype=jnp.float32)

    out = jax.jit(model_forward)(x, gamma1, beta1, w_dw, gamma2, beta2)
    out = jax.block_until_ready(out)

    ref = reference(x, gamma1, beta1, w_dw, gamma2, beta2)
    Hout = (H + 2 - 3) // 2 + 1
    Wout = (W + 2 - 3) // 2 + 1
    assert out.shape == (N, C, Hout, Wout), out.shape
    err = float(jnp.max(jnp.abs(out - ref)))
    assert jnp.allclose(out, ref, atol=2e-4, rtol=2e-4), err

    print("KERNEL_OK")
</pallas_src>

<mosaic_0001>
module attributes {stable_mosaic.version = 11 : i64} {
  func.func @_partial_stats_kernel(%arg0: i32, %arg1: memref<128x128xf32, #tpu.memory_space<vmem>>, %arg2: memref<1x2x128xf32, #tpu.memory_space<vmem>>) attributes {dimension_semantics = [#tpu.dimension_semantics<parallel>], iteration_bounds = array<i64: 1>, scalar_prefetch = 0 : i64, scratch_operands = 0 : i64, tpu.core_type = #tpu.core_type<tc>, window_params = [{transform_indices = @transform_0, window_bounds = array<i64: 128, 128>}, {transform_indices = @transform_1, window_bounds = array<i64: 1, 2, 128>}]} {
    %c0 = arith.constant 0 : index
    %c0_0 = arith.constant 0 : index
    %0 = vector.load %arg1[%c0, %c0_0] : memref<128x128xf32, #tpu.memory_space<vmem>>, vector<128x128xf32>
    %cst = arith.constant dense<0.000000e+00> : vector<128xf32>
    %1 = vector.multi_reduction <add>, %0, %cst [0] : vector<128x128xf32> to vector<128xf32>
    %2 = arith.mulf %0, %0 : vector<128x128xf32>
    %cst_1 = arith.constant dense<0.000000e+00> : vector<128xf32>
    %3 = vector.multi_reduction <add>, %2, %cst_1 [0] : vector<128x128xf32> to vector<128xf32>
    %4 = vector.shape_cast %1 : vector<128xf32> to vector<1x128xf32>
    %5 = vector.shape_cast %3 : vector<128xf32> to vector<1x128xf32>
    %6 = tpu.concatenate %4, %5 in 0 : vector<1x128xf32>, vector<1x128xf32> -> vector<2x128xf32>
    %7 = vector.shape_cast %6 : vector<2x128xf32> to vector<1x2x128xf32>
    %c0_2 = arith.constant 0 : index
    %c0_3 = arith.constant 0 : index
    %c0_4 = arith.constant 0 : index
    %8 = vector.load %arg2[%c0_2, %c0_3, %c0_4] : memref<1x2x128xf32, #tpu.memory_space<vmem>>, vector<1x2x128xf32>
    tpu.vector_store %arg2[%c0_2, %c0_3, %c0_4], %7 {strides = array<i32>} : memref<1x2x128xf32, #tpu.memory_space<vmem>>, vector<1x2x128xf32>,
    return
  }
  func.func @transform_0(%arg0: i32) -> (i32, i32) {
    %c0_i32 = arith.constant 0 : i32
    %c0_i32_0 = arith.constant 0 : i32
    return %arg0, %c0_i32 : i32, i32
  }
  func.func @transform_1(%arg0: i32) -> (i32, i32, i32) {
    %c0_i32 = arith.constant 0 : i32
    %c0_i32_0 = arith.constant 0 : i32
    %c0_i32_1 = arith.constant 0 : i32
    return %arg0, %c0_i32, %c0_i32_0 : i32, i32, i32
  }
}

module attributes {stable_mosaic.version = 11 : i64} {
  func.func @_affine_kernel(%arg0: i32, %arg1: memref<128x128xf32, #tpu.memory_space<vmem>>, %arg2: memref<1x128xf32, #tpu.memory_space<vmem>>, %arg3: memref<1x128xf32, #tpu.memory_space<vmem>>, %arg4: memref<128x128xf32, #tpu.memory_space<vmem>>) attributes {dimension_semantics = [#tpu.dimension_semantics<parallel>], iteration_bounds = array<i64: 1>, scalar_prefetch = 0 : i64, scratch_operands = 0 : i64, tpu.core_type = #tpu.core_type<tc>, window_params = [{transform_indices = @transform_0, window_bounds = array<i64: 128, 128>}, {pipeline_mode = #tpu.pipeline_mode<synchronous>, transform_indices = @transform_1, window_bounds = array<i64: 1, 128>}, {pipeline_mode = #tpu.pipeline_mode<synchronous>, transform_indices = @transform_2, window_bounds = array<i64: 1, 128>}, {transform_indices = @transform_3, window_bounds = array<i64: 128, 128>}]} {
    %c0 = arith.constant 0 : index
    %c0_0 = arith.constant 0 : index
    %0 = vector.load %arg1[%c0, %c0_0] : memref<128x128xf32, #tpu.memory_space<vmem>>, vector<128x128xf32>
    %c0_1 = arith.constant 0 : index
    %c0_2 = arith.constant 0 : index
    %1 = vector.load %arg2[%c0_1, %c0_2] : memref<1x128xf32, #tpu.memory_space<vmem>>, vector<1x128xf32>
    %2 = vector.broadcast %1 : vector<1x128xf32> to vector<128x128xf32>
    %3 = arith.mulf %0, %2 : vector<128x128xf32>
    %c0_3 = arith.constant 0 : index
    %c0_4 = arith.constant 0 : index
    %4 = vector.load %arg3[%c0_3, %c0_4] : memref<1x128xf32, #tpu.memory_space<vmem>>, vector<1x128xf32>
    %5 = vector.broadcast %4 : vector<1x128xf32> to vector<128x128xf32>
    %6 = arith.addf %3, %5 : vector<128x128xf32>
    %cst = arith.constant 0.000000e+00 : f32
    %7 = vector.broadcast %cst : f32 to vector<128x128xf32>
    %8 = arith.maximumf %6, %7 : vector<128x128xf32>
    %c0_5 = arith.constant 0 : index
    %c0_6 = arith.constant 0 : index
    %9 = vector.load %arg4[%c0_5, %c0_6] : memref<128x128xf32, #tpu.memory_space<vmem>>, vector<128x128xf32>
    tpu.vector_store %arg4[%c0_5, %c0_6], %8 {strides = array<i32>} : memref<128x128xf32, #tpu.memory_space<vmem>>, vector<128x128xf32>,
    return
  }
  func.func @transform_0(%arg0: i32) -> (i32, i32) {
    %c0_i32 = arith.constant 0 : i32
    %c0_i32_0 = arith.constant 0 : i32
    return %arg0, %c0_i32 : i32, i32
  }
  func.func @transform_1(%arg0: i32) -> (i32, i32) {
    %c0_i32 = arith.constant 0 : i32
    %c0_i32_0 = arith.constant 0 : i32
    %c0_i32_1 = arith.constant 0 : i32
    return %c0_i32, %c0_i32_0 : i32, i32
  }
  func.func @transform_2(%arg0: i32) -> (i32, i32) {
    %c0_i32 = arith.constant 0 : i32
    %c0_i32_0 = arith.constant 0 : i32
    %c0_i32_1 = arith.constant 0 : i32
    return %c0_i32, %c0_i32_0 : i32, i32
  }
  func.func @transform_3(%arg0: i32) -> (i32, i32) {
    %c0_i32 = arith.constant 0 : i32
    %c0_i32_0 = arith.constant 0 : i32
    return %arg0, %c0_i32 : i32, i32
  }
}

module attributes {stable_mosaic.version = 11 : i64} {
  func.func @_affine_kernel(%arg0: i32, %arg1: memref<32x128xf32, #tpu.memory_space<vmem>>, %arg2: memref<1x128xf32, #tpu.memory_space<vmem>>, %arg3: memref<1x128xf32, #tpu.memory_space<vmem>>, %arg4: memref<32x128xf32, #tpu.memory_space<vmem>>) attributes {dimension_semantics = [#tpu.dimension_semantics<parallel>], iteration_bounds = array<i64: 1>, scalar_prefetch = 0 : i64, scratch_operands = 0 : i64, tpu.core_type = #tpu.core_type<tc>, window_params = [{transform_indices = @transform_0, window_bounds = array<i64: 32, 128>}, {pipeline_mode = #tpu.pipeline_mode<synchronous>, transform_indices = @transform_1, window_bounds = array<i64: 1, 128>}, {pipeline_mode = #tpu.pipeline_mode<synchronous>, transform_indices = @transform_2, window_bounds = array<i64: 1, 128>}, {transform_indices = @transform_3, window_bounds = array<i64: 32, 128>}]} {
    %c0 = arith.constant 0 : index
    %c0_0 = arith.constant 0 : index
    %0 = vector.load %arg1[%c0, %c0_0] : memref<32x128xf32, #tpu.memory_space<vmem>>, vector<32x128xf32>
    %c0_1 = arith.constant 0 : index
    %c0_2 = arith.constant 0 : index
    %1 = vector.load %arg2[%c0_1, %c0_2] : memref<1x128xf32, #tpu.memory_space<vmem>>, vector<1x128xf32>
    %2 = vector.broadcast %1 : vector<1x128xf32> to vector<32x128xf32>
    %3 = arith.mulf %0, %2 : vector<32x128xf32>
    %c0_3 = arith.constant 0 : index
    %c0_4 = arith.constant 0 : index
    %4 = vector.load %arg3[%c0_3, %c0_4] : memref<1x128xf32, #tpu.memory_space<vmem>>, vector<1x128xf32>
    %5 = vector.broadcast %4 : vector<1x128xf32> to vector<32x128xf32>
    %6 = arith.addf %3, %5 : vector<32x128xf32>
    %c0_5 = arith.constant 0 : index
    %c0_6 = arith.constant 0 : index
    %7 = vector.load %arg4[%c0_5, %c0_6] : memref<32x128xf32, #tpu.memory_space<vmem>>, vector<32x128xf32>
    tpu.vector_store %arg4[%c0_5, %c0_6], %6 {strides = array<i32>} : memref<32x128xf32, #tpu.memory_space<vmem>>, vector<32x128xf32>,
    return
  }
  func.func @transform_0(%arg0: i32) -> (i32, i32) {
    %c0_i32 = arith.constant 0 : i32
    %c0_i32_0 = arith.constant 0 : i32
    return %arg0, %c0_i32 : i32, i32
  }
  func.func @transform_1(%arg0: i32) -> (i32, i32) {
    %c0_i32 = arith.constant 0 : i32
    %c0_i32_0 = arith.constant 0 : i32
    %c0_i32_1 = arith.constant 0 : i32
    return %c0_i32, %c0_i32_0 : i32, i32
  }
  func.func @transform_2(%arg0: i32) -> (i32, i32) {
    %c0_i32 = arith.constant 0 : i32
    %c0_i32_0 = arith.constant 0 : i32
    %c0_i32_1 = arith.constant 0 : i32
    return %c0_i32, %c0_i32_0 : i32, i32
  }
  func.func @transform_3(%arg0: i32) -> (i32, i32) {
    %c0_i32 = arith.constant 0 : i32
    %c0_i32_0 = arith.constant 0 : i32
    return %arg0, %c0_i32 : i32, i32
  }
}

module attributes {stable_mosaic.version = 11 : i64} {
  func.func @_dwconv_stats_kernel(%arg0: i32, %arg1: memref<6x8x9x64xf32, #tpu.memory_space<vmem>>, %arg2: memref<3x3x64xf32, #tpu.memory_space<vmem>>, %arg3: memref<8x8x64xf32, #tpu.memory_space<vmem>>, %arg4: memref<1x2x64xf32, #tpu.memory_space<vmem>>) attributes {dimension_semantics = [#tpu.dimension_semantics<parallel>], iteration_bounds = array<i64: 1>, scalar_prefetch = 0 : i64, scratch_operands = 0 : i64, tpu.core_type = #tpu.core_type<tc>, window_params = [{transform_indices = @transform_0, window_bounds = array<i64: 6, 8, 9, 64>}, {pipeline_mode = #tpu.pipeline_mode<synchronous>, transform_indices = @transform_1, window_bounds = array<i64: 3, 3, 64>}, {transform_indices = @transform_2, window_bounds = array<i64: 8, 8, 64>}, {transform_indices = @transform_3, window_bounds = array<i64: 1, 2, 64>}]} {
    %c0 = arith.constant 0 : index
    %c0_0 = arith.constant 0 : index
    %c0_1 = arith.constant 0 : index
    %0 = vector.load %arg2[%c0, %c0_0, %c0_1] : memref<3x3x64xf32, #tpu.memory_space<vmem>>, vector<3x3x64xf32>
    %cst = arith.constant 0.000000e+00 : f32
    %1 = vector.broadcast %cst : f32 to vector<8x8x64xf32>
    %c0_2 = arith.constant 0 : index
    %c0_3 = arith.constant 0 : index
    %c0_4 = arith.constant 0 : index
    %c0_5 = arith.constant 0 : index
    %2 = vector.load %arg1[%c0_2, %c0_3, %c0_4, %c0_5] : memref<6x8x9x64xf32, #tpu.memory_space<vmem>>, vector<1x8x9x64xf32>
    %3 = vector.shape_cast %2 : vector<1x8x9x64xf32> to vector<8x9x64xf32>
    %c1 = arith.constant 1 : index
    %c0_6 = arith.constant 0 : index
    %c0_7 = arith.constant 0 : index
    %c0_8 = arith.constant 0 : index
    %4 = vector.load %arg1[%c1, %c0_6, %c0_7, %c0_8] : memref<6x8x9x64xf32, #tpu.memory_space<vmem>>, vector<1x8x9x64xf32>
    %5 = vector.shape_cast %4 : vector<1x8x9x64xf32> to vector<8x9x64xf32>
    %6 = vector.extract_strided_slice %3 {offsets = [0, 0, 0], sizes = [8, 8, 64], strides = [1, 1, 1]} : vector<8x9x64xf32> to vector<8x8x64xf32>
    %7 = vector.extract_strided_slice %0 {offsets = [0, 0, 0], sizes = [1, 1, 64], strides = [1, 1, 1]} : vector<3x3x64xf32> to vector<1x1x64xf32>
    %8 = vector.shape_cast %7 : vector<1x1x64xf32> to vector<64xf32>
    %9 = vector.shape_cast %8 : vector<64xf32> to vector<1x1x64xf32>
    %10 = vector.broadcast %9 : vector<1x1x64xf32> to vector<8x8x64xf32>
    %11 = arith.mulf %6, %10 : vector<8x8x64xf32>
    %12 = arith.addf %1, %11 : vector<8x8x64xf32>
    %13 = vector.extract_strided_slice %5 {offsets = [0, 0, 0], sizes = [8, 8, 64], strides = [1, 1, 1]} : vector<8x9x64xf32> to vector<8x8x64xf32>
    %14 = vector.extract_strided_slice %0 {offsets = [0, 1, 0], sizes = [1, 1, 64], strides = [1, 1, 1]} : vector<3x3x64xf32> to vector<1x1x64xf32>
    %15 = vector.shape_cast %14 : vector<1x1x64xf32> to vector<64xf32>
    %16 = vector.shape_cast %15 : vector<64xf32> to vector<1x1x64xf32>
    %17 = vector.broadcast %16 : vector<1x1x64xf32> to vector<8x8x64xf32>
    %18 = arith.mulf %13, %17 : vector<8x8x64xf32>
    %19 = arith.addf %12, %18 : vector<8x8x64xf32>
    %20 = vector.extract_strided_slice %3 {offsets = [0, 1, 0], sizes = [8, 8, 64], strides = [1, 1, 1]} : vector<8x9x64xf32> to vector<8x8x64xf32>
    %21 = vector.extract_strided_slice %0 {offsets = [0, 2, 0], sizes = [1, 1, 64], strides = [1, 1, 1]} : vector<3x3x64xf32> to vector<1x1x64xf32>
    %22 = vector.shape_cast %21 : vector<1x1x64xf32> to vector<64xf32>
    %23 = vector.shape_cast %22 : vector<64xf32> to vector<1x1x64xf32>
    %24 = vector.broadcast %23 : vector<1x1x64xf32> to vector<8x8x64xf32>
    %25 = arith.mulf %20, %24 : vector<8x8x64xf32>
    %26 = arith.addf %19, %25 : vector<8x8x64xf32>
    %c2 = arith.constant 2 : index
    %c0_9 = arith.constant 0 : index
    %c0_10 = arith.constant 0 : index
    %c0_11 = arith.constant 0 : index
    %27 = vector.load %arg1[%c2, %c0_9, %c0_10, %c0_11] : memref<6x8x9x64xf32, #tpu.memory_space<vmem>>, vector<1x8x9x64xf32>
    %28 = vector.shape_cast %27 : vector<1x8x9x64xf32> to vector<8x9x64xf32>
    %c3 = arith.constant 3 : index
    %c0_12 = arith.constant 0 : index
    %c0_13 = arith.constant 0 : index
    %c0_14 = arith.constant 0 : index
    %29 = vector.load %arg1[%c3, %c0_12, %c0_13, %c0_14] : memref<6x8x9x64xf32, #tpu.memory_space<vmem>>, vector<1x8x9x64xf32>
    %30 = vector.shape_cast %29 : vector<1x8x9x64xf32> to vector<8x9x64xf32>
    %31 = vector.extract_strided_slice %28 {offsets = [0, 0, 0], sizes = [8, 8, 64], strides = [1, 1, 1]} : vector<8x9x64xf32> to vector<8x8x64xf32>
    %32 = vector.extract_strided_slice %0 {offsets = [1, 0, 0], sizes = [1, 1, 64], strides = [1, 1, 1]} : vector<3x3x64xf32> to vector<1x1x64xf32>
    %33 = vector.shape_cast %32 : vector<1x1x64xf32> to vector<64xf32>
    %34 = vector.shape_cast %33 : vector<64xf32> to vector<1x1x64xf32>
    %35 = vector.broadcast %34 : vector<1x1x64xf32> to vector<8x8x64xf32>
    %36 = arith.mulf %31, %35 : vector<8x8x64xf32>
    %37 = arith.addf %26, %36 : vector<8x8x64xf32>
    %38 = vector.extract_strided_slice %30 {offsets = [0, 0, 0], sizes = [8, 8, 64], strides = [1, 1, 1]} : vector<8x9x64xf32> to vector<8x8x64xf32>
    %39 = vector.extract_strided_slice %0 {offsets = [1, 1, 0], sizes = [1, 1, 64], strides = [1, 1, 1]} : vector<3x3x64xf32> to vector<1x1x64xf32>
    %40 = vector.shape_cast %39 : vector<1x1x64xf32> to vector<64xf32>
    %41 = vector.shape_cast %40 : vector<64xf32> to vector<1x1x64xf32>
    %42 = vector.broadcast %41 : vector<1x1x64xf32> to vector<8x8x64xf32>
    %43 = arith.mulf %38, %42 : vector<8x8x64xf32>
    %44 = arith.addf %37, %43 : vector<8x8x64xf32>
    %45 = vector.extract_strided_slice %28 {offsets = [0, 1, 0], sizes = [8, 8, 64], strides = [1, 1, 1]} : vector<8x9x64xf32> to vector<8x8x64xf32>
    %46 = vector.extract_strided_slice %0 {offsets = [1, 2, 0], sizes = [1, 1, 64], strides = [1, 1, 1]} : vector<3x3x64xf32> to vector<1x1x64xf32>
    %47 = vector.shape_cast %46 : vector<1x1x64xf32> to vector<64xf32>
    %48 = vector.shape_cast %47 : vector<64xf32> to vector<1x1x64xf32>
    %49 = vector.broadcast %48 : vector<1x1x64xf32> to vector<8x8x64xf32>
    %50 = arith.mulf %45, %49 : vector<8x8x64xf32>
    %51 = arith.addf %44, %50 : vector<8x8x64xf32>
    %c4 = arith.constant 4 : index
    %c0_15 = arith.constant 0 : index
    %c0_16 = arith.constant 0 : index
    %c0_17 = arith.constant 0 : index
    %52 = vector.load %arg1[%c4, %c0_15, %c0_16, %c0_17] : memref<6x8x9x64xf32, #tpu.memory_space<vmem>>, vector<1x8x9x64xf32>
    %53 = vector.shape_cast %52 : vector<1x8x9x64xf32> to vector<8x9x64xf32>
    %c5 = arith.constant 5 : index
    %c0_18 = arith.constant 0 : index
    %c0_19 = arith.constant 0 : index
    %c0_20 = arith.constant 0 : index
    %54 = vector.load %arg1[%c5, %c0_18, %c0_19, %c0_20] : memref<6x8x9x64xf32, #tpu.memory_space<vmem>>, vector<1x8x9x64xf32>
    %55 = vector.shape_cast %54 : vector<1x8x9x64xf32> to vector<8x9x64xf32>
    %56 = vector.extract_strided_slice %53 {offsets = [0, 0, 0], sizes = [8, 8, 64], strides = [1, 1, 1]} : vector<8x9x64xf32> to vector<8x8x64xf32>
    %57 = vector.extract_strided_slice %0 {offsets = [2, 0, 0], sizes = [1, 1, 64], strides = [1, 1, 1]} : vector<3x3x64xf32> to vector<1x1x64xf32>
    %58 = vector.shape_cast %57 : vector<1x1x64xf32> to vector<64xf32>
    %59 = vector.shape_cast %58 : vector<64xf32> to vector<1x1x64xf32>
    %60 = vector.broadcast %59 : vector<1x1x64xf32> to vector<8x8x64xf32>
    %61 = arith.mulf %56, %60 : vector<8x8x64xf32>
    %62 = arith.addf %51, %61 : vector<8x8x64xf32>
    %63 = vector.extract_strided_slice %55 {offsets = [0, 0, 0], sizes = [8, 8, 64], strides = [1, 1, 1]} : vector<8x9x64xf32> to vector<8x8x64xf32>
    %64 = vector.extract_strided_slice %0 {offsets = [2, 1, 0], sizes = [1, 1, 64], strides = [1, 1, 1]} : vector<3x3x64xf32> to vector<1x1x64xf32>
    %65 = vector.shape_cast %64 : vector<1x1x64xf32> to vector<64xf32>
    %66 = vector.shape_cast %65 : vector<64xf32> to vector<1x1x64xf32>
    %67 = vector.broadcast %66 : vector<1x1x64xf32> to vector<8x8x64xf32>
    %68 = arith.mulf %63, %67 : vector<8x8x64xf32>
    %69 = arith.addf %62, %68 : vector<8x8x64xf32>
    %70 = vector.extract_strided_slice %53 {offsets = [0, 1, 0], sizes = [8, 8, 64], strides = [1, 1, 1]} : vector<8x9x64xf32> to vector<8x8x64xf32>
    %71 = vector.extract_strided_slice %0 {offsets = [2, 2, 0], sizes = [1, 1, 64], strides = [1, 1, 1]} : vector<3x3x64xf32> to vector<1x1x64xf32>
    %72 = vector.shape_cast %71 : vector<1x1x64xf32> to vector<64xf32>
    %73 = vector.shape_cast %72 : vector<64xf32> to vector<1x1x64xf32>
    %74 = vector.broadcast %73 : vector<1x1x64xf32> to vector<8x8x64xf32>
    %75 = arith.mulf %70, %74 : vector<8x8x64xf32>
    %76 = arith.addf %69, %75 : vector<8x8x64xf32>
    %c0_21 = arith.constant 0 : index
    %c0_22 = arith.constant 0 : index
    %c0_23 = arith.constant 0 : index
    %77 = vector.load %arg3[%c0_21, %c0_22, %c0_23] : memref<8x8x64xf32, #tpu.memory_space<vmem>>, vector<8x8x64xf32>
    tpu.vector_store %arg3[%c0_21, %c0_22, %c0_23], %76 {strides = array<i32>} : memref<8x8x64xf32, #tpu.memory_space<vmem>>, vector<8x8x64xf32>,
    %cst_24 = arith.constant dense<0.000000e+00> : vector<64xf32>
    %78 = vector.multi_reduction <add>, %76, %cst_24 [0, 1] : vector<8x8x64xf32> to vector<64xf32>
    %79 = arith.mulf %76, %76 : vector<8x8x64xf32>
    %cst_25 = arith.constant dense<0.000000e+00> : vector<64xf32>
    %80 = vector.multi_reduction <add>, %79, %cst_25 [0, 1] : vector<8x8x64xf32> to vector<64xf32>
    %81 = vector.shape_cast %78 : vector<64xf32> to vector<1x64xf32>
    %82 = vector.shape_cast %80 : vector<64xf32> to vector<1x64xf32>
    %83 = tpu.concatenate %81, %82 in 0 : vector<1x64xf32>, vector<1x64xf32> -> vector<2x64xf32>
    %84 = vector.shape_cast %83 : vector<2x64xf32> to vector<1x2x64xf32>
    %c0_26 = arith.constant 0 : index
    %c0_27 = arith.constant 0 : index
    %c0_28 = arith.constant 0 : index
    %85 = vector.load %arg4[%c0_26, %c0_27, %c0_28] : memref<1x2x64xf32, #tpu.memory_space<vmem>>, vector<1x2x64xf32>
    tpu.vector_store %arg4[%c0_26, %c0_27, %c0_28], %84 {strides = array<i32>} : memref<1x2x64xf32, #tpu.memory_space<vmem>>, vector<1x2x64xf32>,
    return
  }
  func.func @transform_0(%arg0: i32) -> (i32, i32, i32, i32) {
    %c0_i32 = arith.constant 0 : i32
    %c0_i32_0 = arith.constant 0 : i32
    %c0_i32_1 = arith.constant 0 : i32
    %c0_i32_2 = arith.constant 0 : i32
    return %c0_i32, %arg0, %c0_i32_0, %c0_i32_1 : i32, i32, i32, i32
  }
  func.func @transform_1(%arg0: i32) -> (i32, i32, i32) {
    %c0_i32 = arith.constant 0 : i32
    %c0_i32_0 = arith.constant 0 : i32
    %c0_i32_1 = arith.constant 0 : i32
    %c0_i32_2 = arith.constant 0 : i32
    return %c0_i32, %c0_i32_0, %c0_i32_1 : i32, i32, i32
  }
  func.func @transform_2(%arg0: i32) -> (i32, i32, i32) {
    %c0_i32 = arith.constant 0 : i32
    %c0_i32_0 = arith.constant 0 : i32
    %c0_i32_1 = arith.constant 0 : i32
    return %arg0, %c0_i32, %c0_i32_0 : i32, i32, i32
  }
  func.func @transform_3(%arg0: i32) -> (i32, i32, i32) {
    %c0_i32 = arith.constant 0 : i32
    %c0_i32_0 = arith.constant 0 : i32
    %c0_i32_1 = arith.constant 0 : i32
    return %arg0, %c0_i32, %c0_i32_0 : i32, i32, i32
  }
}

</mosaic_0001>

<llo_original>
// kernel: tile.24
$region0: #{tile.24}
  %s0 = inlined_call_operand.vmem [shape: f32[2,64], index: 0, kind: input, shape index: {}]
  %s1 = inlined_call_operand.vmem [shape: f32[1,128], index: 1, kind: output, shape index: {}]
  $region1: #{tile.24} parent=0
    #allocation0 [shape = 'u8[4096]{0}', space=vmem, size = 0x1000, scoped, tag = 'scoped mem for output reshape']
    #allocation1 [shape = 'u8[4096]{0}', space=vmem, size = 0x1000, scoped, tag = 'scoped mem for input reshape']
    %s3 = ssub.s32 4, 1
    %v4 = vld [vmem:[%s0] sm:%s3]
    %5 = vst [vmem:[#allocation1] sm:%s3] %v4
    %v6 = vld [vmem:[#allocation1] sm:$0x1]
    %vm7 = vcmask 523264
    %8 = vst.msk [vmem:[#allocation0] sm:$0x1] %vm7, %v6
    %s9 = scalar_lea.vmem [#allocation1], 1
    %v10 = vld [vmem:[%s9] sm:$0x1]
    %11 = vrot.lane.b32.xlu0 %v10, 64
    %v12 = vpop.permute.xlu0 %11
    %vm13 = vcmask 1048064
    %14 = vst.msk [vmem:[#allocation0] sm:$0x1] %vm13, %v12
    %s16 = ssub.s32 2, 1
    %v17 = vld [vmem:[#allocation0] sm:%s16]
    %s19 = ssub.s32 2, 1
    %20 = vst [vmem:[%s1] sm:%s19] %v17

// kernel: tile.23
$region0: #{tile.23}
  #allocation0 [shape = 's32[1]{0}', space=sflag, size = 0x4, scoped, tag = 'scoped memory for tile.23']
  %s0 = inlined_call_operand.vmem [shape: f32[64], index: 0, kind: input, shape index: {}]
  %s1 = inlined_call_operand.vmem [shape: f32[2,64], index: 1, kind: output, shape index: {}]
  // Predicated region
  $region2: #{tile.23} parent=0 // pred_check
    _
  $region3: #{tile.23} parent=0 // pred_check_branch
    %3 = sbr.rel (0) target = $region5
  $region4: #{tile.23} parent=0 // pred_region
    _
  $region5: #{tile.23} parent=0 // pred_fallthru
    _
  %v4 = vld [vmem:[%s0] ss:$0 sm:$0xff]
  %5 = vst [vmem:[%s1] sm:$0x3] %v4

// kernel: model_forward.4
$region0: #{model_forward.4}
  #allocation0 [shape = 'u32[]', space=smem, size = 0x4, offset = 0x4, fixed_abs, tag = 'smem constant byte address 0x4 - core index']
  #allocation1 [shape = 'u32[72,128]{1,0:T(1,128)}', space=vmem, size = 0x9000, scoped, tag = 'internal scratch']
  %s0 = inlined_call_operand.vmem [shape: f32[128,128], index: 0, kind: input, shape index: {}]
  %s1 = inlined_call_operand.vmem [shape: f32[1,2,128], index: 1, kind: output, shape index: {}]
  %s2 = sld [smem:[#allocation0]]
  $region14: #{model_forward.4} parent=0
    _
  %s4 = ssub.s32 1, %s2
  %s5 = scalar_select 0, %s4, %s2
  // Predicated region
  $region2: #{model_forward.4} parent=0 // pred_check
    _
  $region3: #{model_forward.4} parent=0 // pred_check_branch
    %7 = sbr.rel (0) target = $region5
  $region4: #{model_forward.4} parent=0 // pred_region
    _
  $region5: #{model_forward.4} parent=0 // pred_fallthru
    _
  %v8 = vld [vmem:[%s0] sm:$0xff]
  %v9 = vld [vmem:[%s0 + $0x8] sm:$0xff]
  %v10 = vld [vmem:[%s0 + $0x10] sm:$0xff]
  %v11 = vld [vmem:[%s0 + $0x18] sm:$0xff]
  %v12 = vld [vmem:[%s0 + $0x20] sm:$0xff]
  %v13 = vld [vmem:[%s0 + $0x28] sm:$0xff]
  %v14 = vld [vmem:[%s0 + $0x30] sm:$0xff]
  %v15 = vld [vmem:[%s0 + $0x38] sm:$0xff]
  %v16 = vld [vmem:[%s0 + $0x40] sm:$0xff]
  %v17 = vld [vmem:[%s0 + $0x48] sm:$0xff]
  %v18 = vld [vmem:[%s0 + $0x50] sm:$0xff]
  %v19 = vld [vmem:[%s0 + $0x58] sm:$0xff]
  %v20 = vld [vmem:[%s0 + $0x60] sm:$0xff]
  %v21 = vld [vmem:[%s0 + $0x68] sm:$0xff]
  %v22 = vld [vmem:[%s0 + $0x70] sm:$0xff]
  %v23 = vld [vmem:[%s0 + $0x78] sm:$0xff]
  %v24 = vadd.f32 %v8, %v9
  %v25 = vadd.f32 %v24, %v10
  %v26 = vadd.f32 %v25, %v11
  %v27 = vadd.f32 %v26, %v12
  %v28 = vadd.f32 %v27, %v13
  %v29 = vadd.f32 %v28, %v14
  %v30 = vadd.f32 %v29, %v15
  %v31 = vadd.f32 %v30, %v16
  %v32 = vadd.f32 %v31, %v17
  %v33 = vadd.f32 %v32, %v18
  %v34 = vadd.f32 %v33, %v19
  %v35 = vadd.f32 %v34, %v20
  %v36 = vadd.f32 %v35, %v21
  %v37 = vadd.f32 %v36, %v22
  %v38 = vadd.f32 %v37, %v23
  %v39 = vrot.slane %v38, 4
  %v40 = vadd.f32 %v38, %v39
  %v41 = vrot.slane %v40, 2
  %v42 = vadd.f32 %v40, %v41
  %v43 = vrot.slane %v42, 1
  %v44 = vadd.f32 %v42, %v43
  %v45 = vmul.f32 %v8, %v8
  %v46 = vmul.f32 %v9, %v9
  %v47 = vmul.f32 %v10, %v10
  %v48 = vmul.f32 %v11, %v11
  %v49 = vmul.f32 %v12, %v12
  %v50 = vmul.f32 %v13, %v13
  %v51 = vmul.f32 %v14, %v14
  %v52 = vmul.f32 %v15, %v15
  %v53 = vmul.f32 %v16, %v16
  %v54 = vmul.f32 %v17, %v17
  %v55 = vmul.f32 %v18, %v18
  %v56 = vmul.f32 %v19, %v19
  %v57 = vmul.f32 %v20, %v20
  %v58 = vmul.f32 %v21, %v21
  %v59 = vmul.f32 %v22, %v22
  %v60 = vmul.f32 %v23, %v23
  %v61 = vadd.f32 %v45, %v46
  %v62 = vadd.f32 %v61, %v47
  %v63 = vadd.f32 %v62, %v48
  %v64 = vadd.f32 %v63, %v49
  %v65 = vadd.f32 %v64, %v50
  %v66 = vadd.f32 %v65, %v51
  %v67 = vadd.f32 %v66, %v52
  %v68 = vadd.f32 %v67, %v53
  %v69 = vadd.f32 %v68, %v54
  %v70 = vadd.f32 %v69, %v55
  %v71 = vadd.f32 %v70, %v56
  %v72 = vadd.f32 %v71, %v57
  %v73 = vadd.f32 %v72, %v58
  %v74 = vadd.f32 %v73, %v59
  %v75 = vadd.f32 %v74, %v60
  %v76 = vrot.slane %v75, 4
  %v77 = vadd.f32 %v75, %v76
  %v78 = vrot.slane %v77, 2
  %v79 = vadd.f32 %v77, %v78
  %v80 = vrot.slane %v79, 1
  %v81 = vadd.f32 %v79, %v80
  %vm82 = vcmask 1040384
  %v83 = vsel %vm82, %v44, %v81
  %84 = vst [vmem:[%s1] sm:$0x3] %v83
  // Predicated region
  $region6: #{model_forward.4} parent=0 // pred_check
    _
  $region7: #{model_forward.4} parent=0 // pred_check_branch
    %86 = sbr.rel (0) target = $region9
  $region8: #{model_forward.4} parent=0 // pred_region
    _
  $region9: #{model_forward.4} parent=0 // pred_fallthru
    _
  // Predicated region
  $region10: #{model_forward.4} parent=0 // pred_check
    _
  $region11: #{model_forward.4} parent=0 // pred_check_branch
    %88 = sbr.rel (0) target = $region13
  $region12: #{model_forward.4} parent=0 // pred_region
    _
  $region13: #{model_forward.4} parent=0 // pred_fallthru
    _

// kernel: model_forward.5
$region0: #{model_forward.5}
  #allocation0 [shape = 'u32[]', space=smem, size = 0x4, offset = 0x4, fixed_abs, tag = 'smem constant byte address 0x4 - core index']
  #allocation1 [shape = 'u32[72,128]{1,0:T(1,128)}', space=vmem, size = 0x9000, scoped, tag = 'internal scratch']
  %s0 = inlined_call_operand.vmem [shape: f32[128,128], index: 0, kind: input, shape index: {}]
  %s1 = inlined_call_operand.vmem [shape: f32[1,128], index: 1, kind: input, shape index: {}]
  %s2 = inlined_call_operand.vmem [shape: f32[1,128], index: 2, kind: input, shape index: {}]
  %s3 = inlined_call_operand.vmem [shape: f32[128,128], index: 3, kind: output, shape index: {}]
  %s4 = sld [smem:[#allocation0]]
  $region22: #{model_forward.5} parent=0
    _
  %s6 = ssub.s32 1, %s4
  %s7 = scalar_select 0, %s6, %s4
  // Predicated region
  $region2: #{model_forward.5} parent=0 // pred_check
    _
  $region3: #{model_forward.5} parent=0 // pred_check_branch
    %9 = sbr.rel (0) target = $region5
  $region4: #{model_forward.5} parent=0 // pred_region
    _
  $region5: #{model_forward.5} parent=0 // pred_fallthru
    _
  // Predicated region
  $region6: #{model_forward.5} parent=0 // pred_check
    _
  $region7: #{model_forward.5} parent=0 // pred_check_branch
    %11 = sbr.rel (0) target = $region9
  $region8: #{model_forward.5} parent=0 // pred_region
    _
  $region9: #{model_forward.5} parent=0 // pred_fallthru
    _
  // Predicated region
  $region10: #{model_forward.5} parent=0 // pred_check
    _
  $region11: #{model_forward.5} parent=0 // pred_check_branch
    %13 = sbr.rel (0) target = $region13
  $region12: #{model_forward.5} parent=0 // pred_region
    _
  $region13: #{model_forward.5} parent=0 // pred_fallthru
    _
  %v14 = vld [vmem:[%s0] sm:$0xff]
  %v15 = vld [vmem:[%s0 + $0x8] sm:$0xff]
  %v16 = vld [vmem:[%s0 + $0x10] sm:$0xff]
  %v17 = vld [vmem:[%s0 + $0x18] sm:$0xff]
  %v18 = vld [vmem:[%s0 + $0x20] sm:$0xff]
  %v19 = vld [vmem:[%s0 + $0x28] sm:$0xff]
  %v20 = vld [vmem:[%s0 + $0x30] sm:$0xff]
  %v21 = vld [vmem:[%s0 + $0x38] sm:$0xff]
  %v22 = vld [vmem:[%s0 + $0x40] sm:$0xff]
  %v23 = vld [vmem:[%s0 + $0x48] sm:$0xff]
  %v24 = vld [vmem:[%s0 + $0x50] sm:$0xff]
  %v25 = vld [vmem:[%s0 + $0x58] sm:$0xff]
  %v26 = vld [vmem:[%s0 + $0x60] sm:$0xff]
  %v27 = vld [vmem:[%s0 + $0x68] sm:$0xff]
  %v28 = vld [vmem:[%s0 + $0x70] sm:$0xff]
  %v29 = vld [vmem:[%s0 + $0x78] sm:$0xff]
  %v30 = vld [vmem:[%s1] sm:$0x1]
  %v32 = vperm.slane %v30, 0
  %v34 = vmul.f32 %v14, %v32
  %v35 = vmul.f32 %v15, %v32
  %v36 = vmul.f32 %v16, %v32
  %v37 = vmul.f32 %v17, %v32
  %v38 = vmul.f32 %v18, %v32
  %v39 = vmul.f32 %v19, %v32
  %v40 = vmul.f32 %v20, %v32
  %v41 = vmul.f32 %v21, %v32
  %v42 = vmul.f32 %v22, %v32
  %v43 = vmul.f32 %v23, %v32
  %v44 = vmul.f32 %v24, %v32
  %v45 = vmul.f32 %v25, %v32
  %v46 = vmul.f32 %v26, %v32
  %v47 = vmul.f32 %v27, %v32
  %v48 = vmul.f32 %v28, %v32
  %v49 = vmul.f32 %v29, %v32
  %v50 = vld [vmem:[%s2] sm:$0x1]
  %v52 = vperm.slane %v50, 0
  %v54 = vadd.f32 %v34, %v52
  %v55 = vadd.f32 %v35, %v52
  %v56 = vadd.f32 %v36, %v52
  %v57 = vadd.f32 %v37, %v52
  %v58 = vadd.f32 %v38, %v52
  %v59 = vadd.f32 %v39, %v52
  %v60 = vadd.f32 %v40, %v52
  %v61 = vadd.f32 %v41, %v52
  %v62 = vadd.f32 %v42, %v52
  %v63 = vadd.f32 %v43, %v52
  %v64 = vadd.f32 %v44, %v52
  %v65 = vadd.f32 %v45, %v52
  %v66 = vadd.f32 %v46, %v52
  %v67 = vadd.f32 %v47, %v52
  %v68 = vadd.f32 %v48, %v52
  %v69 = vadd.f32 %v49, %v52
  %v70 = vmax.f32 %v54, 0.0
  %v71 = vmax.f32 %v55, 0.0
  %v72 = vmax.f32 %v56, 0.0
  %v73 = vmax.f32 %v57, 0.0
  %v74 = vmax.f32 %v58, 0.0
  %v75 = vmax.f32 %v59, 0.0
  %v76 = vmax.f32 %v60, 0.0
  %v77 = vmax.f32 %v61, 0.0
  %v78 = vmax.f32 %v62, 0.0
  %v79 = vmax.f32 %v63, 0.0
  %v80 = vmax.f32 %v64, 0.0
  %v81 = vmax.f32 %v65, 0.0
  %v82 = vmax.f32 %v66, 0.0
  %v83 = vmax.f32 %v67, 0.0
  %v84 = vmax.f32 %v68, 0.0
  %v85 = vmax.f32 %v69, 0.0
  %86 = vst [vmem:[%s3] sm:$0xff] %v70
  %87 = vst [vmem:[%s3 + $0x8] sm:$0xff] %v71
  %88 = vst [vmem:[%s3 + $0x10] sm:$0xff] %v72
  %89 = vst [vmem:[%s3 + $0x18] sm:$0xff] %v73
  %90 = vst [vmem:[%s3 + $0x20] sm:$0xff] %v74
  %91 = vst [vmem:[%s3 + $0x28] sm:$0xff] %v75
  %92 = vst [vmem:[%s3 + $0x30] sm:$0xff] %v76
  %93 = vst [vmem:[%s3 + $0x38] sm:$0xff] %v77
  %94 = vst [vmem:[%s3 + $0x40] sm:$0xff] %v78
  %95 = vst [vmem:[%s3 + $0x48] sm:$0xff] %v79
  %96 = vst [vmem:[%s3 + $0x50] sm:$0xff] %v80
  %97 = vst [vmem:[%s3 + $0x58] sm:$0xff] %v81
  %98 = vst [vmem:[%s3 + $0x60] sm:$0xff] %v82
  %99 = vst [vmem:[%s3 + $0x68] sm:$0xff] %v83
  %100 = vst [vmem:[%s3 + $0x70] sm:$0xff] %v84
  %101 = vst [vmem:[%s3 + $0x78] sm:$0xff] %v85
  // Predicated region
  $region14: #{model_forward.5} parent=0 // pred_check
    _
  $region15: #{model_forward.5} parent=0 // pred_check_branch
    %103 = sbr.rel (0) target = $region17
  $region16: #{model_forward.5} parent=0 // pred_region
    _
  $region17: #{model_forward.5} parent=0 // pred_fallthru
    _
  // Predicated region
  $region18: #{model_forward.5} parent=0 // pred_check
    _
  $region19: #{model_forward.5} parent=0 // pred_check_branch
    %105 = sbr.rel (0) target = $region21
  $region20: #{model_forward.5} parent=0 // pred_region
    _
  $region21: #{model_forward.5} parent=0 // pred_fallthru
    _

// kernel: model_forward.7
$region0: #{model_forward.7}
  #allocation0 [shape = 'u32[]', space=smem, size = 0x4, offset = 0x4, fixed_abs, tag = 'smem constant byte address 0x4 - core index']
  #allocation1 [shape = 'u32[72,128]{1,0:T(1,128)}', space=vmem, size = 0x9000, scoped, tag = 'internal scratch']
  %s0 = inlined_call_operand.vmem [shape: f32[32,128], index: 0, kind: input, shape index: {}]
  %s1 = inlined_call_operand.vmem [shape: f32[1,128], index: 1, kind: input, shape index: {}]
  %s2 = inlined_call_operand.vmem [shape: f32[1,128], index: 2, kind: input, shape index: {}]
  %s3 = inlined_call_operand.vmem [shape: f32[32,128], index: 3, kind: output, shape index: {}]
  %s4 = sld [smem:[#allocation0]]
  $region22: #{model_forward.7} parent=0
    _
  %s6 = ssub.s32 1, %s4
  %s7 = scalar_select 0, %s6, %s4
  // Predicated region
  $region2: #{model_forward.7} parent=0 // pred_check
    _
  $region3: #{model_forward.7} parent=0 // pred_check_branch
    %9 = sbr.rel (0) target = $region5
  $region4: #{model_forward.7} parent=0 // pred_region
    _
  $region5: #{model_forward.7} parent=0 // pred_fallthru
    _
  // Predicated region
  $region6: #{model_forward.7} parent=0 // pred_check
    _
  $region7: #{model_forward.7} parent=0 // pred_check_branch
    %11 = sbr.rel (0) target = $region9
  $region8: #{model_forward.7} parent=0 // pred_region
    _
  $region9: #{model_forward.7} parent=0 // pred_fallthru
    _
  // Predicated region
  $region10: #{model_forward.7} parent=0 // pred_check
    _
  $region11: #{model_forward.7} parent=0 // pred_check_branch
    %13 = sbr.rel (0) target = $region13
  $region12: #{model_forward.7} parent=0 // pred_region
    _
  $region13: #{model_forward.7} parent=0 // pred_fallthru
    _
  %v14 = vld [vmem:[%s0] sm:$0xff]
  %v15 = vld [vmem:[%s0 + $0x8] sm:$0xff]
  %v16 = vld [vmem:[%s0 + $0x10] sm:$0xff]
  %v17 = vld [vmem:[%s0 + $0x18] sm:$0xff]
  %v18 = vld [vmem:[%s1] sm:$0x1]
  %v20 = vperm.slane %v18, 0
  %v22 = vmul.f32 %v14, %v20
  %v23 = vmul.f32 %v15, %v20
  %v24 = vmul.f32 %v16, %v20
  %v25 = vmul.f32 %v17, %v20
  %v26 = vld [vmem:[%s2] sm:$0x1]
  %v28 = vperm.slane %v26, 0
  %v30 = vadd.f32 %v22, %v28
  %v31 = vadd.f32 %v23, %v28
  %v32 = vadd.f32 %v24, %v28
  %v33 = vadd.f32 %v25, %v28
  %34 = vst [vmem:[%s3] sm:$0xff] %v30
  %35 = vst [vmem:[%s3 + $0x8] sm:$0xff] %v31
  %36 = vst [vmem:[%s3 + $0x10] sm:$0xff] %v32
  %37 = vst [vmem:[%s3 + $0x18] sm:$0xff] %v33
  // Predicated region
  $region14: #{model_forward.7} parent=0 // pred_check
    _
  $region15: #{model_forward.7} parent=0 // pred_check_branch
    %39 = sbr.rel (0) target = $region17
  $region16: #{model_forward.7} parent=0 // pred_region
    _
  $region17: #{model_forward.7} parent=0 // pred_fallthru
    _
  // Predicated region
  $region18: #{model_forward.7} parent=0 // pred_check
    _
  $region19: #{model_forward.7} parent=0 // pred_check_branch
    %41 = sbr.rel (0) target = $region21
  $region20: #{model_forward.7} parent=0 // pred_region
    _
  $region21: #{model_forward.7} parent=0 // pred_fallthru
    _

// kernel: model_forward.6
$region0: #{model_forward.6}
  #allocation0 [shape = 'u32[]', space=smem, size = 0x4, offset = 0x4, fixed_abs, tag = 'smem constant byte address 0x4 - core index']
  #allocation1 [shape = 'u32[72,128]{1,0:T(1,128)}', space=vmem, size = 0x9000, scoped, tag = 'internal scratch']
  %s0 = inlined_call_operand.vmem [shape: f32[6,8,9,64], index: 0, kind: input, shape index: {}]
  %s1 = inlined_call_operand.vmem [shape: f32[3,3,64], index: 1, kind: input, shape index: {}]
  %s2 = inlined_call_operand.vmem [shape: f32[8,8,64], index: 2, kind: output, shape index: {0}]
  %s3 = inlined_call_operand.vmem [shape: f32[1,2,64], index: 3, kind: output, shape index: {1}]
  %4 = xla_tuple %s2, %s3
  %s5 = sld [smem:[#allocation0]]
  $region26: #{model_forward.6} parent=0
    _
  %s7 = ssub.s32 1, %s5
  %s8 = scalar_select 0, %s7, %s5
  // Predicated region
  $region2: #{model_forward.6} parent=0 // pred_check
    _
  $region3: #{model_forward.6} parent=0 // pred_check_branch
    %10 = sbr.rel (0) target = $region5
  $region4: #{model_forward.6} parent=0 // pred_region
    _
  $region5: #{model_forward.6} parent=0 // pred_fallthru
    _
  // Predicated region
  $region6: #{model_forward.6} parent=0 // pred_check
    _
  $region7: #{model_forward.6} parent=0 // pred_check_branch
    %12 = sbr.rel (0) target = $region9
  $region8: #{model_forward.6} parent=0 // pred_region
    _
  $region9: #{model_forward.6} parent=0 // pred_fallthru
    _
  %v13 = vld [vmem:[%s1] sm:$0x7]
  %v14 = vld [vmem:[%s1 + $0x4] sm:$0x7]
  %v15 = vld [vmem:[%s1 + $0x8] sm:$0x7]
  %v16 = vld [vmem:[%s0] sm:$0xff]
  %v17 = vld [vmem:[%s0 + $0x8] sm:$0x1]
  %v18 = vld [vmem:[%s0 + $0x10] sm:$0xff]
  %v19 = vld [vmem:[%s0 + $0x18] sm:$0x1]
  %v20 = vld [vmem:[%s0 + $0x20] sm:$0xff]
  %v21 = vld [vmem:[%s0 + $0x28] sm:$0x1]
  %v22 = vld [vmem:[%s0 + $0x30] sm:$0xff]
  %v23 = vld [vmem:[%s0 + $0x38] sm:$0x1]
  %v24 = vld [vmem:[%s0 + $0x40] sm:$0xff]
  %v25 = vld [vmem:[%s0 + $0x48] sm:$0x1]
  %v26 = vld [vmem:[%s0 + $0x50] sm:$0xff]
  %v27 = vld [vmem:[%s0 + $0x58] sm:$0x1]
  %v28 = vld [vmem:[%s0 + $0x60] sm:$0xff]
  %v29 = vld [vmem:[%s0 + $0x68] sm:$0x1]
  %v30 = vld [vmem:[%s0 + $0x70] sm:$0xff]
  %v31 = vld [vmem:[%s0 + $0x78] sm:$0x1]
  %s32 = scalar_lea.vmem %s0, 128
  %v33 = vld [vmem:[%s32] sm:$0xff]
  %v34 = vld [vmem:[%s32 + $0x10] sm:$0xff]
  %v35 = vld [vmem:[%s32 + $0x20] sm:$0xff]
  %v36 = vld [vmem:[%s32 + $0x30] sm:$0xff]
  %v37 = vld [vmem:[%s32 + $0x40] sm:$0xff]
  %v38 = vld [vmem:[%s32 + $0x50] sm:$0xff]
  %v39 = vld [vmem:[%s32 + $0x60] sm:$0xff]
  %v40 = vld [vmem:[%s32 + $0x70] sm:$0xff]
  %v41 = vperm.slane %v13, 0
  %v42 = vmul.f32 %v16, %v41
  %v43 = vmul.f32 %v18, %v41
  %v44 = vmul.f32 %v20, %v41
  %v45 = vmul.f32 %v22, %v41
  %v46 = vmul.f32 %v24, %v41
  %v47 = vmul.f32 %v26, %v41
  %v48 = vmul.f32 %v28, %v41
  %v49 = vmul.f32 %v30, %v41
  %v50 = vadd.f32 %v42, 0.0
  %v51 = vadd.f32 %v43, 0.0
  %v52 = vadd.f32 %v44, 0.0
  %v53 = vadd.f32 %v45, 0.0
  %v54 = vadd.f32 %v46, 0.0
  %v55 = vadd.f32 %v47, 0.0
  %v56 = vadd.f32 %v48, 0.0
  %v57 = vadd.f32 %v49, 0.0
  %v58 = vperm.slane %v13, 1
  %v59 = vmul.f32 %v33, %v58
  %v60 = vmul.f32 %v34, %v58
  %v61 = vmul.f32 %v35, %v58
  %v62 = vmul.f32 %v36, %v58
  %v63 = vmul.f32 %v37, %v58
  %v64 = vmul.f32 %v38, %v58
  %v65 = vmul.f32 %v39, %v58
  %v66 = vmul.f32 %v40, %v58
  %v67 = vadd.f32 %v50, %v59
  %v68 = vadd.f32 %v51, %v60
  %v69 = vadd.f32 %v52, %v61
  %v70 = vadd.f32 %v53, %v62
  %v71 = vadd.f32 %v54, %v63
  %v72 = vadd.f32 %v55, %v64
  %v73 = vadd.f32 %v56, %v65
  %v74 = vadd.f32 %v57, %v66
  %v75 = vperm.slane %v13, 2
  %v76 = vmul.f32 %v16, %v75
  %v77 = vmul.f32 %v17, %v75
  %v78 = vmul.f32 %v18, %v75
  %v79 = vmul.f32 %v19, %v75
  %v80 = vmul.f32 %v20, %v75
  %v81 = vmul.f32 %v21, %v75
  %v82 = vmul.f32 %v22, %v75
  %v83 = vmul.f32 %v23, %v75
  %v84 = vmul.f32 %v24, %v75
  %v85 = vmul.f32 %v25, %v75
  %v86 = vmul.f32 %v26, %v75
  %v87 = vmul.f32 %v27, %v75
  %v88 = vmul.f32 %v28, %v75
  %v89 = vmul.f32 %v29, %v75
  %v90 = vmul.f32 %v30, %v75
  %v91 = vmul.f32 %v31, %v75
  %vm108 = vcmask 1046528
  %v109 = vrot.slane %v76, 1
  %v110 = vrot.slane %v77, 1
  %v111 = vsel %vm108, %v109, %v110
  %v112 = vrot.slane %v78, 1
  %v113 = vrot.slane %v79, 1
  %v114 = vsel %vm108, %v112, %v113
  %v115 = vrot.slane %v80, 1
  %v116 = vrot.slane %v81, 1
  %v117 = vsel %vm108, %v115, %v116
  %v118 = vrot.slane %v82, 1
  %v119 = vrot.slane %v83, 1
  %v120 = vsel %vm108, %v118, %v119
  %v121 = vrot.slane %v84, 1
  %v122 = vrot.slane %v85, 1
  %v123 = vsel %vm108, %v121, %v122
  %v124 = vrot.slane %v86, 1
  %v125 = vrot.slane %v87, 1
  %v126 = vsel %vm108, %v124, %v125
  %v127 = vrot.slane %v88, 1
  %v128 = vrot.slane %v89, 1
  %v129 = vsel %vm108, %v127, %v128
  %v130 = vrot.slane %v90, 1
  %v131 = vrot.slane %v91, 1
  %v132 = vsel %vm108, %v130, %v131
  %v141 = vadd.f32 %v67, %v111
  %v142 = vadd.f32 %v68, %v114
  %v143 = vadd.f32 %v69, %v117
  %v144 = vadd.f32 %v70, %v120
  %v145 = vadd.f32 %v71, %v123
  %v146 = vadd.f32 %v72, %v126
  %v147 = vadd.f32 %v73, %v129
  %v148 = vadd.f32 %v74, %v132
  %s149 = scalar_lea.vmem %s0, 256
  %v150 = vld [vmem:[%s149] sm:$0xff]
  %v151 = vld [vmem:[%s149 + $0x8] sm:$0x1]
  %v152 = vld [vmem:[%s149 + $0x10] sm:$0xff]
  %v153 = vld [vmem:[%s149 + $0x18] sm:$0x1]
  %v154 = vld [vmem:[%s149 + $0x20] sm:$0xff]
  %v155 = vld [vmem:[%s149 + $0x28] sm:$0x1]
  %v156 = vld [vmem:[%s149 + $0x30] sm:$0xff]
  %v157 = vld [vmem:[%s149 + $0x38] sm:$0x1]
  %v158 = vld [vmem:[%s149 + $0x40] sm:$0xff]
  %v159 = vld [vmem:[%s149 + $0x48] sm:$0x1]
  %v160 = vld [vmem:[%s149 + $0x50] sm:$0xff]
  %v161 = vld [vmem:[%s149 + $0x58] sm:$0x1]
  %v162 = vld [vmem:[%s149 + $0x60] sm:$0xff]
  %v163 = vld [vmem:[%s149 + $0x68] sm:$0x1]
  %v164 = vld [vmem:[%s149 + $0x70] sm:$0xff]
  %v165 = vld [vmem:[%s149 + $0x78] sm:$0x1]
  %s166 = scalar_lea.vmem %s0, 384
  %v167 = vld [vmem:[%s166] sm:$0xff]
  %v168 = vld [vmem:[%s166 + $0x10] sm:$0xff]
  %v169 = vld [vmem:[%s166 + $0x20] sm:$0xff]
  %v170 = vld [vmem:[%s166 + $0x30] sm:$0xff]
  %v171 = vld [vmem:[%s166 + $0x40] sm:$0xff]
  %v172 = vld [vmem:[%s166 + $0x50] sm:$0xff]
  %v173 = vld [vmem:[%s166 + $0x60] sm:$0xff]
  %v174 = vld [vmem:[%s166 + $0x70] sm:$0xff]
  %v175 = vperm.slane %v14, 0
  %v176 = vmul.f32 %v150, %v175
  %v177 = vmul.f32 %v152, %v175
  %v178 = vmul.f32 %v154, %v175
  %v179 = vmul.f32 %v156, %v175
  %v180 = vmul.f32 %v158, %v175
  %v181 = vmul.f32 %v160, %v175
  %v182 = vmul.f32 %v162, %v175
  %v183 = vmul.f32 %v164, %v175
  %v184 = vadd.f32 %v141, %v176
  %v185 = vadd.f32 %v142, %v177
  %v186 = vadd.f32 %v143, %v178
  %v187 = vadd.f32 %v144, %v179
  %v188 = vadd.f32 %v145, %v180
  %v189 = vadd.f32 %v146, %v181
  %v190 = vadd.f32 %v147, %v182
  %v191 = vadd.f32 %v148, %v183
  %v192 = vperm.slane %v14, 1
  %v193 = vmul.f32 %v167, %v192
  %v194 = vmul.f32 %v168, %v192
  %v195 = vmul.f32 %v169, %v192
  %v196 = vmul.f32 %v170, %v192
  %v197 = vmul.f32 %v171, %v192
  %v198 = vmul.f32 %v172, %v192
  %v199 = vmul.f32 %v173, %v192
  %v200 = vmul.f32 %v174, %v192
  %v201 = vadd.f32 %v184, %v193
  %v202 = vadd.f32 %v185, %v194
  %v203 = vadd.f32 %v186, %v195
  %v204 = vadd.f32 %v187, %v196
  %v205 = vadd.f32 %v188, %v197
  %v206 = vadd.f32 %v189, %v198
  %v207 = vadd.f32 %v190, %v199
  %v208 = vadd.f32 %v191, %v200
  %v209 = vperm.slane %v14, 2
  %v210 = vmul.f32 %v150, %v209
  %v211 = vmul.f32 %v151, %v209
  %v212 = vmul.f32 %v152, %v209
  %v213 = vmul.f32 %v153, %v209
  %v214 = vmul.f32 %v154, %v209
  %v215 = vmul.f32 %v155, %v209
  %v216 = vmul.f32 %v156, %v209
  %v217 = vmul.f32 %v157, %v209
  %v218 = vmul.f32 %v158, %v209
  %v219 = vmul.f32 %v159, %v209
  %v220 = vmul.f32 %v160, %v209
  %v221 = vmul.f32 %v161, %v209
  %v222 = vmul.f32 %v162, %v209
  %v223 = vmul.f32 %v163, %v209
  %v224 = vmul.f32 %v164, %v209
  %v225 = vmul.f32 %v165, %v209
  %v242 = vrot.slane %v210, 1
  %v243 = vrot.slane %v211, 1
  %v244 = vsel %vm108, %v242, %v243
  %v245 = vrot.slane %v212, 1
  %v246 = vrot.slane %v213, 1
  %v247 = vsel %vm108, %v245, %v246
  %v248 = vrot.slane %v214, 1
  %v249 = vrot.slane %v215, 1
  %v250 = vsel %vm108, %v248, %v249
  %v251 = vrot.slane %v216, 1
  %v252 = vrot.slane %v217, 1
  %v253 = vsel %vm108, %v251, %v252
  %v254 = vrot.slane %v218, 1
  %v255 = vrot.slane %v219, 1
  %v256 = vsel %vm108, %v254, %v255
  %v257 = vrot.slane %v220, 1
  %v258 = vrot.slane %v221, 1
  %v259 = vsel %vm108, %v257, %v258
  %v260 = vrot.slane %v222, 1
  %v261 = vrot.slane %v223, 1
  %v262 = vsel %vm108, %v260, %v261
  %v263 = vrot.slane %v224, 1
  %v264 = vrot.slane %v225, 1
  %v265 = vsel %vm108, %v263, %v264
  %v274 = vadd.f32 %v201, %v244
  %v275 = vadd.f32 %v202, %v247
  %v276 = vadd.f32 %v203, %v250
  %v277 = vadd.f32 %v204, %v253
  %v278 = vadd.f32 %v205, %v256
  %v279 = vadd.f32 %v206, %v259
  %v280 = vadd.f32 %v207, %v262
  %v281 = vadd.f32 %v208, %v265
  %s282 = scalar_lea.vmem %s0, 512
  %v283 = vld [vmem:[%s282] sm:$0xff]
  %v284 = vld [vmem:[%s282 + $0x8] sm:$0x1]
  %v285 = vld [vmem:[%s282 + $0x10] sm:$0xff]
  %v286 = vld [vmem:[%s282 + $0x18] sm:$0x1]
  %v287 = vld [vmem:[%s282 + $0x20] sm:$0xff]
  %v288 = vld [vmem:[%s282 + $0x28] sm:$0x1]
  %v289 = vld [vmem:[%s282 + $0x30] sm:$0xff]
  %v290 = vld [vmem:[%s282 + $0x38] sm:$0x1]
  %v291 = vld [vmem:[%s282 + $0x40] sm:$0xff]
  %v292 = vld [vmem:[%s282 + $0x48] sm:$0x1]
  %v293 = vld [vmem:[%s282 + $0x50] sm:$0xff]
  %v294 = vld [vmem:[%s282 + $0x58] sm:$0x1]
  %v295 = vld [vmem:[%s282 + $0x60] sm:$0xff]
  %v296 = vld [vmem:[%s282 + $0x68] sm:$0x1]
  %v297 = vld [vmem:[%s282 + $0x70] sm:$0xff]
  %v298 = vld [vmem:[%s282 + $0x78] sm:$0x1]
  %s299 = scalar_lea.vmem %s0, 640
  %v300 = vld [vmem:[%s299] sm:$0xff]
  %v301 = vld [vmem:[%s299 + $0x10] sm:$0xff]
  %v302 = vld [vmem:[%s299 + $0x20] sm:$0xff]
  %v303 = vld [vmem:[%s299 + $0x30] sm:$0xff]
  %v304 = vld [vmem:[%s299 + $0x40] sm:$0xff]
  %v305 = vld [vmem:[%s299 + $0x50] sm:$0xff]
  %v306 = vld [vmem:[%s299 + $0x60] sm:$0xff]
  %v307 = vld [vmem:[%s299 + $0x70] sm:$0xff]
  %v308 = vperm.slane %v15, 0
  %v309 = vmul.f32 %v283, %v308
  %v310 = vmul.f32 %v285, %v308
  %v311 = vmul.f32 %v287, %v308
  %v312 = vmul.f32 %v289, %v308
  %v313 = vmul.f32 %v291, %v308
  %v314 = vmul.f32 %v293, %v308
  %v315 = vmul.f32 %v295, %v308
  %v316 = vmul.f32 %v297, %v308
  %v317 = vadd.f32 %v274, %v309
  %v318 = vadd.f32 %v275, %v310
  %v319 = vadd.f32 %v276, %v311
  %v320 = vadd.f32 %v277, %v312
  %v321 = vadd.f32 %v278, %v313
  %v322 = vadd.f32 %v279, %v314
  %v323 = vadd.f32 %v280, %v315
  %v324 = vadd.f32 %v281, %v316
  %v325 = vperm.slane %v15, 1
  %v326 = vmul.f32 %v300, %v325
  %v327 = vmul.f32 %v301, %v325
  %v328 = vmul.f32 %v302, %v325
  %v329 = vmul.f32 %v303, %v325
  %v330 = vmul.f32 %v304, %v325
  %v331 = vmul.f32 %v305, %v325
  %v332 = vmul.f32 %v306, %v325
  %v333 = vmul.f32 %v307, %v325
  %v334 = vadd.f32 %v317, %v326
  %v335 = vadd.f32 %v318, %v327
  %v336 = vadd.f32 %v319, %v328
  %v337 = vadd.f32 %v320, %v329
  %v338 = vadd.f32 %v321, %v330
  %v339 = vadd.f32 %v322, %v331
  %v340 = vadd.f32 %v323, %v332
  %v341 = vadd.f32 %v324, %v333
  %v342 = vperm.slane %v15, 2
  %v343 = vmul.f32 %v283, %v342
  %v344 = vmul.f32 %v284, %v342
  %v345 = vmul.f32 %v285, %v342
  %v346 = vmul.f32 %v286, %v342
  %v347 = vmul.f32 %v287, %v342
  %v348 = vmul.f32 %v288, %v342
  %v349 = vmul.f32 %v289, %v342
  %v350 = vmul.f32 %v290, %v342
  %v351 = vmul.f32 %v291, %v342
  %v352 = vmul.f32 %v292, %v342
  %v353 = vmul.f32 %v293, %v342
  %v354 = vmul.f32 %v294, %v342
  %v355 = vmul.f32 %v295, %v342
  %v356 = vmul.f32 %v296, %v342
  %v357 = vmul.f32 %v297, %v342
  %v358 = vmul.f32 %v298, %v342
  %v375 = vrot.slane %v343, 1
  %v376 = vrot.slane %v344, 1
  %v377 = vsel %vm108, %v375, %v376
  %v378 = vrot.slane %v345, 1
  %v379 = vrot.slane %v346, 1
  %v380 = vsel %vm108, %v378, %v379
  %v381 = vrot.slane %v347, 1
  %v382 = vrot.slane %v348, 1
  %v383 = vsel %vm108, %v381, %v382
  %v384 = vrot.slane %v349, 1
  %v385 = vrot.slane %v350, 1
  %v386 = vsel %vm108, %v384, %v385
  %v387 = vrot.slane %v351, 1
  %v388 = vrot.slane %v352, 1
  %v389 = vsel %vm108, %v387, %v388
  %v390 = vrot.slane %v353, 1
  %v391 = vrot.slane %v354, 1
  %v392 = vsel %vm108, %v390, %v391
  %v393 = vrot.slane %v355, 1
  %v394 = vrot.slane %v356, 1
  %v395 = vsel %vm108, %v393, %v394
  %v396 = vrot.slane %v357, 1
  %v397 = vrot.slane %v358, 1
  %v398 = vsel %vm108, %v396, %v397
  %v407 = vadd.f32 %v334, %v377
  %v408 = vadd.f32 %v335, %v380
  %v409 = vadd.f32 %v336, %v383
  %v410 = vadd.f32 %v337, %v386
  %v411 = vadd.f32 %v338, %v389
  %v412 = vadd.f32 %v339, %v392
  %v413 = vadd.f32 %v340, %v395
  %v414 = vadd.f32 %v341, %v398
  %vm415 = vcmask 523264
  %416 = vst.msk [vmem:[%s2] sm:$0xff] %vm415, %v407
  %417 = vst.msk [vmem:[%s2 + $0x8] sm:$0xff] %vm415, %v408
  %418 = vst.msk [vmem:[%s2 + $0x10] sm:$0xff] %vm415, %v409
  %419 = vst.msk [vmem:[%s2 + $0x18] sm:$0xff] %vm415, %v410
  %420 = vst.msk [vmem:[%s2 + $0x20] sm:$0xff] %vm415, %v411
  %421 = vst.msk [vmem:[%s2 + $0x28] sm:$0xff] %vm415, %v412
  %422 = vst.msk [vmem:[%s2 + $0x30] sm:$0xff] %vm415, %v413
  %423 = vst.msk [vmem:[%s2 + $0x38] sm:$0xff] %vm415, %v414
  %v424 = vsel %vm415, %v407, 0.0
  %v425 = vsel %vm415, %v408, 0.0
  %v426 = vadd.f32 %v424, %v425
  %v427 = vsel %vm415, %v409, 0.0
  %v428 = vadd.f32 %v426, %v427
  %v429 = vsel %vm415, %v410, 0.0
  %v430 = vadd.f32 %v428, %v429
  %v431 = vsel %vm415, %v411, 0.0
  %v432 = vadd.f32 %v430, %v431
  %v433 = vsel %vm415, %v412, 0.0
  %v434 = vadd.f32 %v432, %v433
  %v435 = vsel %vm415, %v413, 0.0
  %v436 = vadd.f32 %v434, %v435
  %v437 = vsel %vm415, %v414, 0.0
  %v438 = vadd.f32 %v436, %v437
  %v439 = vrot.slane %v438, 4
  %v440 = vadd.f32 %v438, %v439
  %v441 = vrot.slane %v440, 2
  %v442 = vadd.f32 %v440, %v441
  %v443 = vrot.slane %v442, 1
  %v444 = vadd.f32 %v442, %v443
  %v445 = vmul.f32 %v407, %v407
  %v446 = vmul.f32 %v408, %v408
  %v447 = vmul.f32 %v409, %v409
  %v448 = vmul.f32 %v410, %v410
  %v449 = vmul.f32 %v411, %v411
  %v450 = vmul.f32 %v412, %v412
  %v451 = vmul.f32 %v413, %v413
  %v452 = vmul.f32 %v414, %v414
  %v453 = vsel %vm415, %v445, 0.0
  %v454 = vsel %vm415, %v446, 0.0
  %v455 = vadd.f32 %v453, %v454
  %v456 = vsel %vm415, %v447, 0.0
  %v457 = vadd.f32 %v455, %v456
  %v458 = vsel %vm415, %v448, 0.0
  %v459 = vadd.f32 %v457, %v458
  %v460 = vsel %vm415, %v449, 0.0
  %v461 = vadd.f32 %v459, %v460
  %v462 = vsel %vm415, %v450, 0.0
  %v463 = vadd.f32 %v461, %v462
  %v464 = vsel %vm415, %v451, 0.0
  %v465 = vadd.f32 %v463, %v464
  %v466 = vsel %vm415, %v452, 0.0
  %v467 = vadd.f32 %v465, %v466
  %v468 = vrot.slane %v467, 4
  %v469 = vadd.f32 %v467, %v468
  %v470 = vrot.slane %v469, 2
  %v471 = vadd.f32 %v469, %v470
  %v472 = vrot.slane %v471, 1
  %v473 = vadd.f32 %v471, %v472
  %vm474 = vcmask 1040384
  %v475 = vsel %vm474, %v444, %v473
  %vm476 = vcmask 517120
  %477 = vst.msk [vmem:[%s3] sm:$0x3] %vm476, %v475
  // Predicated region
  $region10: #{model_forward.6} parent=0 // pred_check
    _
  $region11: #{model_forward.6} parent=0 // pred_check_branch
    %479 = sbr.rel (0) target = $region13
  $region12: #{model_forward.6} parent=0 // pred_region
    _
  $region13: #{model_forward.6} parent=0 // pred_fallthru
    _
  // Predicated region
  $region14: #{model_forward.6} parent=0 // pred_check
    _
  $region15: #{model_forward.6} parent=0 // pred_check_branch
    %481 = sbr.rel (0) target = $region17
  $region16: #{model_forward.6} parent=0 // pred_region
    _
  $region17: #{model_forward.6} parent=0 // pred_fallthru
    _
  // Predicated region
  $region18: #{model_forward.6} parent=0 // pred_check
    _
  $region19: #{model_forward.6} parent=0 // pred_check_branch
    %483 = sbr.rel (0) target = $region21
  $region20: #{model_forward.6} parent=0 // pred_region
    _
  $region21: #{model_forward.6} parent=0 // pred_fallthru
    _
  // Predicated region
  $region22: #{model_forward.6} parent=0 // pred_check
    _
  $region23: #{model_forward.6} parent=0 // pred_check_branch
    %485 = sbr.rel (0) target = $region25
  $region24: #{model_forward.6} parent=0 // pred_region
    _
  $region25: #{model_forward.6} parent=0 // pred_fallthru
    _

</llo_original>
